<compile_context>
chip_gen: v6e
topology: v6e:2x2x1
jax: 0.10.0
libtpu: 0.0.40
codegen_flags: <defaults>
</compile_context>

<pallas_src>
import math

import jax
import jax.numpy as jnp
from jax.experimental import pallas as pl
from jax.experimental.pallas import tpu as pltpu


def _leaky_relu(x, slope=0.01):
    return jnp.where(x > 0, x, slope * x)


def _round_up(x, m):
    return ((x + m - 1) // m) * m


# ----------------------------------------------------------------------------
# Kernel: one batch tile per grid step, all three layers fused.
# ----------------------------------------------------------------------------
def actor_kernel(obs_ref, w1_ref, b1_ref, w2_ref, b2_ref, w3_ref, b3_ref, out_ref):
    x = obs_ref[...]  # (TB, dim_obs) — possibly bf16 for HBM-traffic savings.

    # MXU matmuls accumulate in f32; activations run in f32 on the VPU
    # (v5e has no bf16 VPU, so this is portable).
    h1 = jnp.dot(x, w1_ref[...], preferred_element_type=jnp.float32) + b1_ref[...]
    h1 = _leaky_relu(h1)                                   # (TB, 128) lane-dense

    h2 = jnp.dot(h1, w2_ref[...], preferred_element_type=jnp.float32) + b2_ref[...]
    h2 = _leaky_relu(h2)                                   # (TB, 128) lane-dense

    h3 = jnp.dot(h2, w3_ref[...], preferred_element_type=jnp.float32) + b3_ref[...]
    out_ref[...] = jnp.tanh(h3).astype(out_ref.dtype)      # (TB, dim_act)


# ----------------------------------------------------------------------------
# Wrapper
# ----------------------------------------------------------------------------
def actor_forward(obs, padded_params, *, block_batch=1024, obs_dtype=jnp.float32):
    """obs: (batch, dim_obs) f32.  padded_params: lane-padded (see pad_params)."""
    w1, b1, w2, b2, w3, b3 = padded_params
    batch, dim_obs = obs.shape
    dim_act = w3.shape[1]

    # Batch tile: multiple of 8 sublanes, capped by block_batch, covers batch.
    tb = min(block_batch, _round_up(batch, 8))
    padded_batch = _round_up(batch, tb)
    if padded_batch != batch:
        obs = jnp.pad(obs, ((0, padded_batch - batch), (0, 0)))

    # Optional bf16 streaming of obs (and w1 so the first dot is pure bf16 MXU).
    if obs_dtype == jnp.bfloat16:
        obs = obs.astype(jnp.bfloat16)
        w1 = w1.astype(jnp.bfloat16)

    grid = (padded_batch // tb,)

    hidden = w1.shape[1]  # 128 after padding
    cost = pl.CostEstimate(
        flops=2 * padded_batch * (dim_obs * hidden + hidden * hidden + hidden * dim_act),
        transcendentals=padded_batch * dim_act,
        bytes_accessed=(
            padded_batch * dim_obs * obs.dtype.itemsize
            + padded_batch * dim_act * 4
            + sum(int(p.size) * 4 for p in (w1, b1, w2, b2, w3, b3))
        ),
    )

    out = pl.pallas_call(
        actor_kernel,
        out_shape=jax.ShapeDtypeStruct((padded_batch, dim_act), jnp.float32),
        grid=grid,
        in_specs=[
            # obs: tiled over batch, pipelined.
            pl.BlockSpec((tb, dim_obs), lambda i: (i, 0)),
            # weights / biases: constant block -> stay resident in VMEM.
            pl.BlockSpec(w1.shape, lambda i: (0, 0)),
            pl.BlockSpec(b1.shape, lambda i: (0, 0)),
            pl.BlockSpec(w2.shape, lambda i: (0, 0)),
            pl.BlockSpec(b2.shape, lambda i: (0, 0)),
            pl.BlockSpec(w3.shape, lambda i: (0, 0)),
            pl.BlockSpec(b3.shape, lambda i: (0, 0)),
        ],
        out_specs=pl.BlockSpec((tb, dim_act), lambda i: (i, 0)),
        compiler_params=pltpu.CompilerParams(
            dimension_semantics=("parallel",),  # shard batch tiles across TCs (v7x)
        ),
        cost_estimate=cost,
    )(obs, w1, b1, w2, b2, w3, b3)

    return out[:batch]


# ----------------------------------------------------------------------------
# Parameters
# ----------------------------------------------------------------------------
def init_actor_params(key, dim_obs, dim_actions):
    """Deterministic init mirroring nn.Linear default init followed by
    Actor.reset_params() gain scaling on the weights.  Weights are stored as
    (in_features, out_features) so the kernel computes x @ W + b."""
    gain_lrelu = math.sqrt(2.0 / (1.0 + 0.01 ** 2))   # calculate_gain('leaky_relu')
    gain_tanh = 5.0 / 3.0                             # calculate_gain('tanh')

    def linear_init(k, fan_in, fan_out, gain):
        kw, kb = jax.random.split(k)
        bound = 1.0 / math.sqrt(fan_in)
        w = jax.random.uniform(kw, (fan_in, fan_out), jnp.float32, -bound, bound) * gain
        b = jax.random.uniform(kb, (1, fan_out), jnp.float32, -bound, bound)
        return w, b

    k1, k2, k3 = jax.random.split(key, 3)
    w1, b1 = linear_init(k1, dim_obs, 64, gain_lrelu)
    w2, b2 = linear_init(k2, 64, 32, gain_lrelu)
    w3, b3 = linear_init(k3, 32, dim_actions, gain_tanh)
    return (w1, b1, w2, b2, w3, b3)


def pad_params(params, lanes=128):
    """Zero-pad hidden dims to `lanes` so in-kernel intermediates are
    lane-dense.  Numerically exact.  Do this ONCE, not per forward call."""
    w1, b1, w2, b2, w3, b3 = params
    h1, h2 = w1.shape[1], w2.shape[1]
    w1p = jnp.pad(w1, ((0, 0), (0, lanes - h1)))
    b1p = jnp.pad(b1, ((0, 0), (0, lanes - h1)))
    w2p = jnp.pad(w2, ((0, lanes - h1), (0, lanes - h2)))
    b2p = jnp.pad(b2, ((0, 0), (0, lanes - h2)))
    w3p = jnp.pad(w3, ((0, lanes - h2), (0, 0)))
    return (w1p, b1p, w2p, b2p, w3p, b3)


def actor_reference(obs, params):
    """Pure-JAX reference (unpadded params) for correctness checking."""
    w1, b1, w2, b2, w3, b3 = params
    x = _leaky_relu(obs @ w1 + b1)
    x = _leaky_relu(x @ w2 + b2)
    return jnp.tanh(x @ w3 + b3)


# TODO(synk): for MADDPG deployments with many tiny per-agent batches, stack
# the agents' observations into one (n_agents*batch, dim_obs) call (or add an
# agent grid axis with per-agent weight blocks) instead of one call per agent.

if __name__ == "__main__":
    dim_obs, dim_actions = 16, 8

    key = jax.random.PRNGKey(0)
    k_obs, k_obs2, k_params = jax.random.split(key, 3)

    params = init_actor_params(k_params, dim_obs, dim_actions)
    padded_params = pad_params(params)

    # --- small batch (matches the original module's typical use) ------------
    obs = jax.random.normal(k_obs, (8, dim_obs), dtype=jnp.float32)
    policy = jax.block_until_ready(actor_forward(obs, padded_params))
    ref = actor_reference(obs, params)
    assert policy.shape == (8, dim_actions)
    assert jnp.allclose(policy, ref, atol=1e-5, rtol=1e-5)

    # --- larger batch exercising the batch grid + padding path --------------
    obs2 = jax.random.normal(k_obs2, (300, dim_obs), dtype=jnp.float32)
    policy2 = jax.block_until_ready(
        actor_forward(obs2, padded_params, block_batch=128))
    ref2 = actor_reference(obs2, params)
    assert policy2.shape == (300, dim_actions)
    assert jnp.allclose(policy2, ref2, atol=1e-5, rtol=1e-5)

    # --- bf16 obs streaming (memory-bound large-batch option) ---------------
    policy3 = jax.block_until_ready(
        actor_forward(obs2, padded_params, block_batch=128,
                      obs_dtype=jnp.bfloat16))
    assert jnp.allclose(policy3, ref2, atol=5e-2, rtol=5e-2)

    print("KERNEL_OK")
</pallas_src>

<mosaic_0001>
module attributes {stable_mosaic.version = 11 : i64} {
  func.func @actor_kernel(%arg0: i32, %arg1: memref<8x16xf32, #tpu.memory_space<vmem>>, %arg2: memref<16x128xf32, #tpu.memory_space<vmem>>, %arg3: memref<1x128xf32, #tpu.memory_space<vmem>>, %arg4: memref<128x128xf32, #tpu.memory_space<vmem>>, %arg5: memref<1x128xf32, #tpu.memory_space<vmem>>, %arg6: memref<128x8xf32, #tpu.memory_space<vmem>>, %arg7: memref<1x8xf32, #tpu.memory_space<vmem>>, %arg8: memref<8x8xf32, #tpu.memory_space<vmem>>) attributes {dimension_semantics = [#tpu.dimension_semantics<parallel>], iteration_bounds = array<i64: 1>, scalar_prefetch = 0 : i64, scratch_operands = 0 : i64, tpu.core_type = #tpu.core_type<tc>, window_params = [{transform_indices = @transform_0, window_bounds = array<i64: 8, 16>}, {pipeline_mode = #tpu.pipeline_mode<synchronous>, transform_indices = @transform_1, window_bounds = array<i64: 16, 128>}, {pipeline_mode = #tpu.pipeline_mode<synchronous>, transform_indices = @transform_2, window_bounds = array<i64: 1, 128>}, {pipeline_mode = #tpu.pipeline_mode<synchronous>, transform_indices = @transform_3, window_bounds = array<i64: 128, 128>}, {pipeline_mode = #tpu.pipeline_mode<synchronous>, transform_indices = @transform_4, window_bounds = array<i64: 1, 128>}, {pipeline_mode = #tpu.pipeline_mode<synchronous>, transform_indices = @transform_5, window_bounds = array<i64: 128, 8>}, {pipeline_mode = #tpu.pipeline_mode<synchronous>, transform_indices = @transform_6, window_bounds = array<i64: 1, 8>}, {transform_indices = @transform_7, window_bounds = array<i64: 8, 8>}]} {
    %c0 = arith.constant 0 : index
    %c0_0 = arith.constant 0 : index
    %0 = vector.load %arg1[%c0, %c0_0] : memref<8x16xf32, #tpu.memory_space<vmem>>, vector<8x16xf32>
    %c0_1 = arith.constant 0 : index
    %c0_2 = arith.constant 0 : index
    %1 = vector.load %arg2[%c0_1, %c0_2] : memref<16x128xf32, #tpu.memory_space<vmem>>, vector<16x128xf32>
    %cst = arith.constant dense<0.000000e+00> : vector<8x128xf32>
    %2 = tpu.matmul %0, %1, %cst {dimension_numbers = #tpu.dot_dimension_numbers<[1], [0], [0], [1], [0, 0, 1, 1], [], []>} : vector<8x16xf32>, vector<16x128xf32>, vector<8x128xf32> -> vector<8x128xf32>
    %c0_3 = arith.constant 0 : index
    %c0_4 = arith.constant 0 : index
    %3 = vector.load %arg3[%c0_3, %c0_4] : memref<1x128xf32, #tpu.memory_space<vmem>>, vector<1x128xf32>
    %4 = vector.broadcast %3 : vector<1x128xf32> to vector<8x128xf32>
    %5 = arith.addf %2, %4 : vector<8x128xf32>
    %cst_5 = arith.constant 0.000000e+00 : f32
    %6 = vector.broadcast %cst_5 : f32 to vector<8x128xf32>
    %7 = arith.cmpf ogt, %5, %6 : vector<8x128xf32>
    %cst_6 = arith.constant 0.00999999977 : f32
    %8 = vector.broadcast %cst_6 : f32 to vector<8x128xf32>
    %9 = arith.mulf %8, %5 : vector<8x128xf32>
    %10 = arith.select %7, %5, %9 : vector<8x128xi1>, vector<8x128xf32>
    %c0_7 = arith.constant 0 : index
    %c0_8 = arith.constant 0 : index
    %11 = vector.load %arg4[%c0_7, %c0_8] : memref<128x128xf32, #tpu.memory_space<vmem>>, vector<128x128xf32>
    %cst_9 = arith.constant dense<0.000000e+00> : vector<8x128xf32>
    %12 = tpu.matmul %10, %11, %cst_9 {dimension_numbers = #tpu.dot_dimension_numbers<[1], [0], [0], [1], [0, 0, 1, 1], [], []>} : vector<8x128xf32>, vector<128x128xf32>, vector<8x128xf32> -> vector<8x128xf32>
    %c0_10 = arith.constant 0 : index
    %c0_11 = arith.constant 0 : index
    %13 = vector.load %arg5[%c0_10, %c0_11] : memref<1x128xf32, #tpu.memory_space<vmem>>, vector<1x128xf32>
    %14 = vector.broadcast %13 : vector<1x128xf32> to vector<8x128xf32>
    %15 = arith.addf %12, %14 : vector<8x128xf32>
    %cst_12 = arith.constant 0.000000e+00 : f32
    %16 = vector.broadcast %cst_12 : f32 to vector<8x128xf32>
    %17 = arith.cmpf ogt, %15, %16 : vector<8x128xf32>
    %cst_13 = arith.constant 0.00999999977 : f32
    %18 = vector.broadcast %cst_13 : f32 to vector<8x128xf32>
    %19 = arith.mulf %18, %15 : vector<8x128xf32>
    %20 = arith.select %17, %15, %19 : vector<8x128xi1>, vector<8x128xf32>
    %c0_14 = arith.constant 0 : index
    %c0_15 = arith.constant 0 : index
    %21 = vector.load %arg6[%c0_14, %c0_15] : memref<128x8xf32, #tpu.memory_space<vmem>>, vector<128x8xf32>
    %cst_16 = arith.constant dense<0.000000e+00> : vector<8x8xf32>
    %22 = tpu.matmul %20, %21, %cst_16 {dimension_numbers = #tpu.dot_dimension_numbers<[1], [0], [0], [1], [0, 0, 1, 1], [], []>} : vector<8x128xf32>, vector<128x8xf32>, vector<8x8xf32> -> vector<8x8xf32>
    %c0_17 = arith.constant 0 : index
    %c0_18 = arith.constant 0 : index
    %23 = vector.load %arg7[%c0_17, %c0_18] : memref<1x8xf32, #tpu.memory_space<vmem>>, vector<1x8xf32>
    %24 = vector.broadcast %23 : vector<1x8xf32> to vector<8x8xf32>
    %25 = arith.addf %22, %24 : vector<8x8xf32>
    %26 = math.tanh %25 : vector<8x8xf32>
    %c0_19 = arith.constant 0 : index
    %c0_20 = arith.constant 0 : index
    %27 = vector.load %arg8[%c0_19, %c0_20] : memref<8x8xf32, #tpu.memory_space<vmem>>, vector<8x8xf32>
    tpu.vector_store %arg8[%c0_19, %c0_20], %26 {strides = array<i32>} : memref<8x8xf32, #tpu.memory_space<vmem>>, vector<8x8xf32>,
    return
  }
  func.func @transform_0(%arg0: i32) -> (i32, i32) {
    %c0_i32 = arith.constant 0 : i32
    %c0_i32_0 = arith.constant 0 : i32
    return %arg0, %c0_i32 : i32, i32
  }
  func.func @transform_1(%arg0: i32) -> (i32, i32) {
    %c0_i32 = arith.constant 0 : i32
    %c0_i32_0 = arith.constant 0 : i32
    %c0_i32_1 = arith.constant 0 : i32
    return %c0_i32, %c0_i32_0 : i32, i32
  }
  func.func @transform_2(%arg0: i32) -> (i32, i32) {
    %c0_i32 = arith.constant 0 : i32
    %c0_i32_0 = arith.constant 0 : i32
    %c0_i32_1 = arith.constant 0 : i32
    return %c0_i32, %c0_i32_0 : i32, i32
  }
  func.func @transform_3(%arg0: i32) -> (i32, i32) {
    %c0_i32 = arith.constant 0 : i32
    %c0_i32_0 = arith.constant 0 : i32
    %c0_i32_1 = arith.constant 0 : i32
    return %c0_i32, %c0_i32_0 : i32, i32
  }
  func.func @transform_4(%arg0: i32) -> (i32, i32) {
    %c0_i32 = arith.constant 0 : i32
    %c0_i32_0 = arith.constant 0 : i32
    %c0_i32_1 = arith.constant 0 : i32
    return %c0_i32, %c0_i32_0 : i32, i32
  }
  func.func @transform_5(%arg0: i32) -> (i32, i32) {
    %c0_i32 = arith.constant 0 : i32
    %c0_i32_0 = arith.constant 0 : i32
    %c0_i32_1 = arith.constant 0 : i32
    return %c0_i32, %c0_i32_0 : i32, i32
  }
  func.func @transform_6(%arg0: i32) -> (i32, i32) {
    %c0_i32 = arith.constant 0 : i32
    %c0_i32_0 = arith.constant 0 : i32
    %c0_i32_1 = arith.constant 0 : i32
    return %c0_i32, %c0_i32_0 : i32, i32
  }
  func.func @transform_7(%arg0: i32) -> (i32, i32) {
    %c0_i32 = arith.constant 0 : i32
    %c0_i32_0 = arith.constant 0 : i32
    return %arg0, %c0_i32 : i32, i32
  }
}

</mosaic_0001>

<llo_original>
// kernel: tpu_custom_call.1
$region0: #{tpu_custom_call.1}
  #allocation0 [shape = 'u32[]', space=smem, size = 0x4, offset = 0x4, fixed_abs, tag = 'smem constant byte address 0x4 - core index']
  #allocation1 [shape = 'u32[144,128]{1,0:T(1,128)}', space=vmem, size = 0x12000, scoped, tag = 'internal scratch']
  %s0 = inlined_call_operand.vmem [shape: f32[8,16], index: 0, kind: input, shape index: {}]
  %s1 = inlined_call_operand.hbm [shape: f32[16,128], index: 1, kind: input, shape index: {}]
  %s2 = inlined_call_operand.vmem [shape: f32[1,128], index: 2, kind: input, shape index: {}]
  %s3 = inlined_call_operand.vmem [shape: f32[128,128], index: 3, kind: input, shape index: {}]
  %s4 = inlined_call_operand.hbm [shape: f32[1,128], index: 4, kind: input, shape index: {}]
  %s5 = inlined_call_operand.vmem [shape: f32[128,8], index: 5, kind: input, shape index: {}]
  %s6 = inlined_call_operand.vmem [shape: f32[1,8], index: 6, kind: input, shape index: {}]
  %s7 = inlined_call_operand.hbm [shape: f32[8,8], index: 7, kind: output, shape index: {}]
  %s8 = sld [smem:[#allocation0]]
  $region46: #{tpu_custom_call.1} parent=0
    _
  %s10 = ssub.s32 1, %s8
  %s11 = scalar_select 0, %s10, %s8
  $region1: #{tpu_custom_call.1} parent=0
    #allocation2 [shape = 'u8[8192]{0}', space=vmem, size = 0x2000, scoped, tag = 'input window, operand 1, single buffered']
    #allocation3 [shape = 's32[1]{0}', space=sflag, size = 0x4, scoped, tag = 'scoped memory for tpu_custom_call.1']
    #allocation4 [shape = 's32[1]{0}', space=sflag, size = 0x4, scoped, tag = 'scoped memory for tpu_custom_call.1']
    #allocation5 [shape = 'u8[512]{0}', space=vmem, size = 0x400, scoped, tag = 'input window, operand 4, single buffered']
    #allocation6 [shape = 's32[1]{0}', space=sflag, size = 0x4, scoped, tag = 'scoped memory for tpu_custom_call.1']
    #allocation7 [shape = 'u8[4096]{0}', space=vmem, size = 0x1000, scoped, tag = 'output window, operand 0, single buffered']
    %12 = vsyncpa [#allocation3], 0
    %13 = vsyncpa [#allocation6], 0
    %14 = vsyncpa [#allocation4], 0
    // Predicated region
    $region2: #{tpu_custom_call.1} parent=1 // pred_check
      _
    $region3: #{tpu_custom_call.1} parent=1 // pred_check_branch
      %16 = sbr.rel (0) target = $region5
    $region4: #{tpu_custom_call.1} parent=1 // pred_region
      _
    $region5: #{tpu_custom_call.1} parent=1 // pred_fallthru
      _
    // Predicated region
    $region6: #{tpu_custom_call.1} parent=1 // pred_check
      _
    $region7: #{tpu_custom_call.1} parent=1 // pred_check_branch
      %18 = sbr.rel (0) target = $region9
    $region8: #{tpu_custom_call.1} parent=1 // pred_region
      %s20 = ssub.s32 256, 256
      %21 = vsyncadd [#allocation3], %s20
      %s22 = sshll.u32 [#allocation2], 4
      %s23 = int_to_ptr.vmem [resolvable:$true] %s22
      %28 = dma.hbm_to_vmem [thread:$0]  %s1, 256, %s23, [#allocation3], 128, 128, 8
    $region9: #{tpu_custom_call.1} parent=1 // pred_fallthru
      _
    // Predicated region
    $region10: #{tpu_custom_call.1} parent=1 // pred_check
      _
    $region11: #{tpu_custom_call.1} parent=1 // pred_check_branch
      %30 = sbr.rel (0) target = $region13
    $region12: #{tpu_custom_call.1} parent=1 // pred_region
      _
    $region13: #{tpu_custom_call.1} parent=1 // pred_fallthru
      _
    // Predicated region
    $region14: #{tpu_custom_call.1} parent=1 // pred_check
      _
    $region15: #{tpu_custom_call.1} parent=1 // pred_check_branch
      %32 = sbr.rel (0) target = $region17
    $region16: #{tpu_custom_call.1} parent=1 // pred_region
      _
    $region17: #{tpu_custom_call.1} parent=1 // pred_fallthru
      _
    // Predicated region
    $region18: #{tpu_custom_call.1} parent=1 // pred_check
      _
    $region19: #{tpu_custom_call.1} parent=1 // pred_check_branch
      %34 = sbr.rel (0) target = $region21
    $region20: #{tpu_custom_call.1} parent=1 // pred_region
      %s36 = ssub.s32 16, 16
      %37 = vsyncadd [#allocation6], %s36
      %s39 = sshll.u32 [#allocation5], 4
      %s40 = int_to_ptr.vmem [resolvable:$true] %s39
      %42 = dma.hbm_to_vmem [thread:$0]  %s4, 16, %s40, [#allocation6]
    $region21: #{tpu_custom_call.1} parent=1 // pred_fallthru
      _
    // Predicated region
    $region22: #{tpu_custom_call.1} parent=1 // pred_check
      _
    $region23: #{tpu_custom_call.1} parent=1 // pred_check_branch
      %44 = sbr.rel (0) target = $region25
    $region24: #{tpu_custom_call.1} parent=1 // pred_region
      _
    $region25: #{tpu_custom_call.1} parent=1 // pred_fallthru
      _
    // Predicated region
    $region26: #{tpu_custom_call.1} parent=1 // pred_check
      _
    $region27: #{tpu_custom_call.1} parent=1 // pred_check_branch
      %46 = sbr.rel (0) target = $region29
    $region28: #{tpu_custom_call.1} parent=1 // pred_region
      _
    $region29: #{tpu_custom_call.1} parent=1 // pred_fallthru
      _
    // Predicated region
    $region30: #{tpu_custom_call.1} parent=1 // pred_check
      _
    $region31: #{tpu_custom_call.1} parent=1 // pred_check_branch
      %48 = sbr.rel (0) target = $region33
    $region32: #{tpu_custom_call.1} parent=1 // pred_region
      %49 = dma.done [#allocation3], 256
    $region33: #{tpu_custom_call.1} parent=1 // pred_fallthru
      _
    // Predicated region
    $region34: #{tpu_custom_call.1} parent=1 // pred_check
      _
    $region35: #{tpu_custom_call.1} parent=1 // pred_check_branch
      %51 = sbr.rel (0) target = $region37
    $region36: #{tpu_custom_call.1} parent=1 // pred_region
      %52 = dma.done [#allocation6], 16
    $region37: #{tpu_custom_call.1} parent=1 // pred_fallthru
      _
    %v53 = vld [vmem:[%s0] sm:$0xff]
    %v54 = vld [vmem:[#allocation2] sm:$0xff]
    %v55 = vld [vmem:[#allocation2 + $0x8] sm:$0xff]
    %v56 = vld [vmem:[%s2] sm:$0x1]
    %v58 = vlaneseq
    %v59 = vshrl.u32 %v58, 7
    %v60 = vsub.s32 0, %v59
    %v61 = vrot.slane %v56, %v60
    %vm63 = vcmask 130048
    %v65 = vsel %vm63, %v53, 0
    %67 = vmatprep.subr.mxu0 0.0
    %68 = vmatpush1.msra.mxu0 0.0
    %69 = vmatprep.subr.mxu0 0.0
    %70 = vmatpush1.msra.mxu0 0.0
    %71 = vmatprep.subr.mxu0 0.0
    %72 = vmatpush1.msra.mxu0 0.0
    %73 = vmatprep.subr.mxu0 0.0
    %74 = vmatpush1.msra.mxu0 0.0
    %75 = vmatprep.subr.mxu0 0.0
    %76 = vmatpush1.msra.mxu0 0.0
    %77 = vmatprep.subr.mxu0 0.0
    %78 = vmatpush1.msra.mxu0 0.0
    %79 = vmatprep.subr.mxu0 0.0
    %80 = vmatpush1.msra.mxu0 0.0
    %81 = vmatprep.subr.mxu0 0.0
    %82 = vmatpush1.msra.mxu0 0.0
    %83 = vmatprep.subr.mxu0 0.0
    %84 = vmatpush1.msra.mxu0 0.0
    %85 = vmatprep.subr.mxu0 0.0
    %86 = vmatpush1.msra.mxu0 0.0
    %87 = vmatprep.subr.mxu0 0.0
    %88 = vmatpush1.msra.mxu0 0.0
    %89 = vmatprep.subr.mxu0 0.0
    %90 = vmatpush1.msra.mxu0 0.0
    %91 = vmatprep.subr.mxu0 0.0
    %92 = vmatpush1.msra.mxu0 0.0
    %93 = vmatprep.subr.mxu0 0.0
    %94 = vmatpush1.msra.mxu0 0.0
    %95 = vmatprep.subr.mxu0 0.0
    %96 = vmatpush1.msra.mxu0 %v55
    %97 = vmatprep.subr.mxu0 0.0
    %98 = vmatpush1.msra.mxu0 %v54
    %99 = vmatprep.subr.mxu0 0.0
    %100 = vmatpush2.msra.mxu0 0.0
    %101 = vmatprep.subr.mxu0 0.0
    %102 = vmatpush2.msra.mxu0 0.0
    %103 = vmatprep.subr.mxu0 0.0
    %104 = vmatpush2.msra.mxu0 0.0
    %105 = vmatprep.subr.mxu0 0.0
    %106 = vmatpush2.msra.mxu0 0.0
    %107 = vmatprep.subr.mxu0 0.0
    %108 = vmatpush2.msra.mxu0 0.0
    %109 = vmatprep.subr.mxu0 0.0
    %110 = vmatpush2.msra.mxu0 0.0
    %111 = vmatprep.subr.mxu0 0.0
    %112 = vmatpush2.msra.mxu0 0.0
    %113 = vmatprep.subr.mxu0 0.0
    %114 = vmatpush2.msra.mxu0 0.0
    %115 = vmatprep.subr.mxu0 0.0
    %116 = vmatpush2.msra.mxu0 0.0
    %117 = vmatprep.subr.mxu0 0.0
    %118 = vmatpush2.msra.mxu0 0.0
    %119 = vmatprep.subr.mxu0 0.0
    %120 = vmatpush2.msra.mxu0 0.0
    %121 = vmatprep.subr.mxu0 0.0
    %122 = vmatpush2.msra.mxu0 0.0
    %123 = vmatprep.subr.mxu0 0.0
    %124 = vmatpush2.msra.mxu0 0.0
    %125 = vmatprep.subr.mxu0 0.0
    %126 = vmatpush2.msra.mxu0 0.0
    %127 = vmatprep.subr.mxu0 0.0
    %128 = vmatpush2.msra.mxu0 0.0
    %129 = vmatprep.subr.mxu0 0.0
    %130 = vmatpush2.msra.mxu0 0.0
    %131 = vmatprep.mubr.f32.mxu0 0.0
    %132 = vmatmul.mubr.f32.gmra.mxu0 %v65
    %v133 = vpop.f32.mrf.mxu0
    %v134 = vadd.f32 %v61, %v133
    %v135 = vpop.f32.mrf.mxu0
    %136 = vdwg.mxu0
    %vm137 = vcmp.gt.f32.partialorder %v134, 0.0
    %v138 = vmul.f32 %v134, 0.01
    %v139 = vsel %vm137, %v134, %v138
    %v140 = vld [vmem:[%s3] sm:$0xff]
    %v141 = vld [vmem:[%s3 + $0x8] sm:$0xff]
    %v142 = vld [vmem:[%s3 + $0x10] sm:$0xff]
    %v143 = vld [vmem:[%s3 + $0x18] sm:$0xff]
    %v144 = vld [vmem:[%s3 + $0x20] sm:$0xff]
    %v145 = vld [vmem:[%s3 + $0x28] sm:$0xff]
    %v146 = vld [vmem:[%s3 + $0x30] sm:$0xff]
    %v147 = vld [vmem:[%s3 + $0x38] sm:$0xff]
    %v148 = vld [vmem:[%s3 + $0x40] sm:$0xff]
    %v149 = vld [vmem:[%s3 + $0x48] sm:$0xff]
    %v150 = vld [vmem:[%s3 + $0x50] sm:$0xff]
    %v151 = vld [vmem:[%s3 + $0x58] sm:$0xff]
    %v152 = vld [vmem:[%s3 + $0x60] sm:$0xff]
    %v153 = vld [vmem:[%s3 + $0x68] sm:$0xff]
    %v154 = vld [vmem:[%s3 + $0x70] sm:$0xff]
    %v155 = vld [vmem:[%s3 + $0x78] sm:$0xff]
    %v156 = vld [vmem:[#allocation5] sm:$0x1]
    %v158 = vlaneseq
    %v159 = vshrl.u32 %v158, 7
    %v160 = vsub.s32 0, %v159
    %v161 = vrot.slane %v156, %v160
    %163 = vmatprep.subr.mxu0 0.0
    %164 = vmatpush1.msra.mxu0 %v155
    %165 = vmatprep.subr.mxu0 0.0
    %166 = vmatpush1.msra.mxu0 %v154
    %167 = vmatprep.subr.mxu0 0.0
    %168 = vmatpush1.msra.mxu0 %v153
    %169 = vmatprep.subr.mxu0 0.0
    %170 = vmatpush1.msra.mxu0 %v152
    %171 = vmatprep.subr.mxu0 0.0
    %172 = vmatpush1.msra.mxu0 %v151
    %173 = vmatprep.subr.mxu0 0.0
    %174 = vmatpush1.msra.mxu0 %v150
    %175 = vmatprep.subr.mxu0 0.0
    %176 = vmatpush1.msra.mxu0 %v149
    %177 = vmatprep.subr.mxu0 0.0
    %178 = vmatpush1.msra.mxu0 %v148
    %179 = vmatprep.subr.mxu0 0.0
    %180 = vmatpush1.msra.mxu0 %v147
    %181 = vmatprep.subr.mxu0 0.0
    %182 = vmatpush1.msra.mxu0 %v146
    %183 = vmatprep.subr.mxu0 0.0
    %184 = vmatpush1.msra.mxu0 %v145
    %185 = vmatprep.subr.mxu0 0.0
    %186 = vmatpush1.msra.mxu0 %v144
    %187 = vmatprep.subr.mxu0 0.0
    %188 = vmatpush1.msra.mxu0 %v143
    %189 = vmatprep.subr.mxu0 0.0
    %190 = vmatpush1.msra.mxu0 %v142
    %191 = vmatprep.subr.mxu0 0.0
    %192 = vmatpush1.msra.mxu0 %v141
    %193 = vmatprep.subr.mxu0 0.0
    %194 = vmatpush1.msra.mxu0 %v140
    %195 = vmatprep.subr.mxu0 0.0
    %196 = vmatpush2.msra.mxu0 0.0
    %197 = vmatprep.subr.mxu0 0.0
    %198 = vmatpush2.msra.mxu0 0.0
    %199 = vmatprep.subr.mxu0 0.0
    %200 = vmatpush2.msra.mxu0 0.0
    %201 = vmatprep.subr.mxu0 0.0
    %202 = vmatpush2.msra.mxu0 0.0
    %203 = vmatprep.subr.mxu0 0.0
    %204 = vmatpush2.msra.mxu0 0.0
    %205 = vmatprep.subr.mxu0 0.0
    %206 = vmatpush2.msra.mxu0 0.0
    %207 = vmatprep.subr.mxu0 0.0
    %208 = vmatpush2.msra.mxu0 0.0
    %209 = vmatprep.subr.mxu0 0.0
    %210 = vmatpush2.msra.mxu0 0.0
    %211 = vmatprep.subr.mxu0 0.0
    %212 = vmatpush2.msra.mxu0 0.0
    %213 = vmatprep.subr.mxu0 0.0
    %214 = vmatpush2.msra.mxu0 0.0
    %215 = vmatprep.subr.mxu0 0.0
    %216 = vmatpush2.msra.mxu0 0.0
    %217 = vmatprep.subr.mxu0 0.0
    %218 = vmatpush2.msra.mxu0 0.0
    %219 = vmatprep.subr.mxu0 0.0
    %220 = vmatpush2.msra.mxu0 0.0
    %221 = vmatprep.subr.mxu0 0.0
    %222 = vmatpush2.msra.mxu0 0.0
    %223 = vmatprep.subr.mxu0 0.0
    %224 = vmatpush2.msra.mxu0 0.0
    %225 = vmatprep.subr.mxu0 0.0
    %226 = vmatpush2.msra.mxu0 0.0
    %227 = vmatprep.mubr.f32.mxu0 0.0
    %228 = vmatmul.mubr.f32.gmra.mxu0 %v139
    %v229 = vpop.f32.mrf.mxu0
    %v230 = vadd.f32 %v161, %v229
    %v231 = vpop.f32.mrf.mxu0
    %232 = vdwg.mxu0
    %vm233 = vcmp.gt.f32.partialorder %v230, 0.0
    %v234 = vmul.f32 %v230, 0.01
    %v235 = vsel %vm233, %v230, %v234
    %v236 = vld [vmem:[%s5] sm:$0xff]
    %v237 = vld [vmem:[%s5 + $0x8] sm:$0xff]
    %v238 = vld [vmem:[%s5 + $0x10] sm:$0xff]
    %v239 = vld [vmem:[%s5 + $0x18] sm:$0xff]
    %v240 = vld [vmem:[%s5 + $0x20] sm:$0xff]
    %v241 = vld [vmem:[%s5 + $0x28] sm:$0xff]
    %v242 = vld [vmem:[%s5 + $0x30] sm:$0xff]
    %v243 = vld [vmem:[%s5 + $0x38] sm:$0xff]
    %v244 = vld [vmem:[%s5 + $0x40] sm:$0xff]
    %v245 = vld [vmem:[%s5 + $0x48] sm:$0xff]
    %v246 = vld [vmem:[%s5 + $0x50] sm:$0xff]
    %v247 = vld [vmem:[%s5 + $0x58] sm:$0xff]
    %v248 = vld [vmem:[%s5 + $0x60] sm:$0xff]
    %v249 = vld [vmem:[%s5 + $0x68] sm:$0xff]
    %v250 = vld [vmem:[%s5 + $0x70] sm:$0xff]
    %v251 = vld [vmem:[%s5 + $0x78] sm:$0xff]
    %v252 = vld [vmem:[%s6] sm:$0x1]
    %v254 = vlaneseq
    %v255 = vshrl.u32 %v254, 7
    %v256 = vsub.s32 0, %v255
    %v257 = vrot.slane %v252, %v256
    %259 = vmatprep.subr.mxu0 0.0
    %260 = vmatpush1.msra.mxu0 %v251
    %261 = vmatprep.subr.mxu0 0.0
    %262 = vmatpush1.msra.mxu0 %v250
    %263 = vmatprep.subr.mxu0 0.0
    %264 = vmatpush1.msra.mxu0 %v249
    %265 = vmatprep.subr.mxu0 0.0
    %266 = vmatpush1.msra.mxu0 %v248
    %267 = vmatprep.subr.mxu0 0.0
    %268 = vmatpush1.msra.mxu0 %v247
    %269 = vmatprep.subr.mxu0 0.0
    %270 = vmatpush1.msra.mxu0 %v246
    %271 = vmatprep.subr.mxu0 0.0
    %272 = vmatpush1.msra.mxu0 %v245
    %273 = vmatprep.subr.mxu0 0.0
    %274 = vmatpush1.msra.mxu0 %v244
    %275 = vmatprep.subr.mxu0 0.0
    %276 = vmatpush1.msra.mxu0 %v243
    %277 = vmatprep.subr.mxu0 0.0
    %278 = vmatpush1.msra.mxu0 %v242
    %279 = vmatprep.subr.mxu0 0.0
    %280 = vmatpush1.msra.mxu0 %v241
    %281 = vmatprep.subr.mxu0 0.0
    %282 = vmatpush1.msra.mxu0 %v240
    %283 = vmatprep.subr.mxu0 0.0
    %284 = vmatpush1.msra.mxu0 %v239
    %285 = vmatprep.subr.mxu0 0.0
    %286 = vmatpush1.msra.mxu0 %v238
    %287 = vmatprep.subr.mxu0 0.0
    %288 = vmatpush1.msra.mxu0 %v237
    %289 = vmatprep.subr.mxu0 0.0
    %290 = vmatpush1.msra.mxu0 %v236
    %291 = vmatprep.subr.mxu0 0.0
    %292 = vmatpush2.msra.mxu0 0.0
    %293 = vmatprep.subr.mxu0 0.0
    %294 = vmatpush2.msra.mxu0 0.0
    %295 = vmatprep.subr.mxu0 0.0
    %296 = vmatpush2.msra.mxu0 0.0
    %297 = vmatprep.subr.mxu0 0.0
    %298 = vmatpush2.msra.mxu0 0.0
    %299 = vmatprep.subr.mxu0 0.0
    %300 = vmatpush2.msra.mxu0 0.0
    %301 = vmatprep.subr.mxu0 0.0
    %302 = vmatpush2.msra.mxu0 0.0
    %303 = vmatprep.subr.mxu0 0.0
    %304 = vmatpush2.msra.mxu0 0.0
    %305 = vmatprep.subr.mxu0 0.0
    %306 = vmatpush2.msra.mxu0 0.0
    %307 = vmatprep.subr.mxu0 0.0
    %308 = vmatpush2.msra.mxu0 0.0
    %309 = vmatprep.subr.mxu0 0.0
    %310 = vmatpush2.msra.mxu0 0.0
    %311 = vmatprep.subr.mxu0 0.0
    %312 = vmatpush2.msra.mxu0 0.0
    %313 = vmatprep.subr.mxu0 0.0
    %314 = vmatpush2.msra.mxu0 0.0
    %315 = vmatprep.subr.mxu0 0.0
    %316 = vmatpush2.msra.mxu0 0.0
    %317 = vmatprep.subr.mxu0 0.0
    %318 = vmatpush2.msra.mxu0 0.0
    %319 = vmatprep.subr.mxu0 0.0
    %320 = vmatpush2.msra.mxu0 0.0
    %321 = vmatprep.subr.mxu0 0.0
    %322 = vmatpush2.msra.mxu0 0.0
    %323 = vmatprep.mubr.f32.mxu0 0.0
    %324 = vmatmul.mubr.f32.gmra.mxu0 %v235
    %v325 = vpop.f32.mrf.mxu0
    %v326 = vadd.f32 %v257, %v325
    %v327 = vpop.f32.mrf.mxu0
    %328 = vdwg.mxu0
    %v329 = vtanh.pop %v326
    %vm330 = vcmask 64512
    %331 = vst.msk [vmem:[#allocation7] sm:$0xff] %vm330, %v329
    // Predicated region
    $region38: #{tpu_custom_call.1} parent=1 // pred_check
      _
    $region39: #{tpu_custom_call.1} parent=1 // pred_check_branch
      %333 = sbr.rel (0) target = $region41
    $region40: #{tpu_custom_call.1} parent=1 // pred_region
      %s335 = ssub.s32 128, 128
      %336 = vsyncadd [#allocation4], %s335
      %s338 = sshll.u32 [#allocation7], 4
      %s339 = int_to_ptr.vmem [resolvable:$true] %s338
      %341 = dma.vmem_to_hbm [thread:$0]  %s339, 128, %s7, [#allocation4]
    $region41: #{tpu_custom_call.1} parent=1 // pred_fallthru
      _
    // Predicated region
    $region42: #{tpu_custom_call.1} parent=1 // pred_check
      _
    $region43: #{tpu_custom_call.1} parent=1 // pred_check_branch
      %343 = sbr.rel (0) target = $region45
    $region44: #{tpu_custom_call.1} parent=1 // pred_region
      %344 = dma.done [#allocation4], 128
    $region45: #{tpu_custom_call.1} parent=1 // pred_fallthru
      _
    %345 = vsyncpa [#allocation3], 1
    %346 = vsyncpa [#allocation6], 1
    %347 = vsyncpa [#allocation4], 1

</llo_original>
